<compile_context>
chip_gen: v5e
topology: v5e:2x2
jax: 0.10.0
libtpu: 0.0.40
codegen_flags: <defaults>
</compile_context>

<pallas_src>
import jax
import jax.numpy as jnp
from jax import lax
from jax.experimental import pallas as pl
from jax.experimental.pallas import tpu as pltpu


def _round_up(v, m):
    return ((v + m - 1) // m) * m


def _vmem_capacity_bytes():
    """Physical VMEM per TensorCore; conservative 64 MiB (v7x) fallback."""
    try:
        info = pltpu.get_tpu_info()
        for name in ("vmem_capacity_bytes", "vmem_bytes", "vmem_size_bytes"):
            v = getattr(info, name, None)
            if v:
                return int(v)
    except Exception:
        pass
    return 64 << 20


def _channel_pad_bias(c_real, c_pad):
    # (1, 1, c_pad) f32: 0 on real channel columns, +inf on padded ones, so
    # exp(e_min - (energy + bias)) is exactly 0 for padded columns.  Tiny
    # lane-vector instead of a full (bb, C, C) iota + where.
    col = lax.broadcasted_iota(jnp.int32, (1, 1, c_pad), 2)
    return jnp.where(col < c_real, jnp.float32(0.0), jnp.float32(jnp.inf))


def _softmax_rowmax_minus(energy):
    # softmax(rowmax(E) - E) is shift-invariant per row:
    #   == exp(rowmin(E) - E) / sum(exp(rowmin(E) - E))
    # rowmin keeps every exponent argument <= 0 (numerically safe).
    # NOTE: the channel-padding bias must be +inf and must be added BEFORE this
    # min so e_min stays the finite min over real columns; do not switch to
    # -inf masking or post-min masking.
    e_min = jnp.min(energy, axis=-1, keepdims=True)
    p = jnp.exp(e_min - energy)
    denom = jnp.sum(p, axis=-1, keepdims=True)
    # EUP approximate reciprocal (~1e-4 rel err). Use p / denom if bit-parity
    # with the PyTorch module matters (the divide is only O(C^2)).
    return p * pl.reciprocal(denom, approx=True)


# --------------------------------------------------------------------------
# Path A: whole (C, N) slab per batch element (batch-packed).
# --------------------------------------------------------------------------
def _make_fused_kernel(c_real, c_pad, matmul_dtype):
    def kernel(gamma_ref, x_ref, o_ref):
        # gamma_ref: SMEM (1, 1) f32; x_ref / o_ref: VMEM (bb, c_pad, n_pad).
        x = x_ref[...]
        x_mm = x.astype(matmul_dtype)

        # energy[b] = x[b] @ x[b]^T as a contraction over N (no XLU transpose),
        # f32 accumulation on the MXU.
        energy = lax.dot_general(
            x_mm, x_mm,
            dimension_numbers=(((2,), (2,)), ((0,), (0,))),
            preferred_element_type=jnp.float32)            # (bb, c_pad, c_pad)
        if c_pad != c_real:
            energy = energy + _channel_pad_bias(c_real, c_pad)

        attn = _softmax_rowmax_minus(energy)

        # out[b] = attn[b] @ x[b]
        out = lax.dot_general(
            attn.astype(matmul_dtype), x_mm,
            dimension_numbers=(((2,), (1,)), ((0,), (0,))),
            preferred_element_type=jnp.float32)            # (bb, c_pad, n_pad)

        # x -> f32 cast only here (epilogue); no f32 slab held across matmuls.
        o_ref[...] = (gamma_ref[0, 0] * out + x.astype(jnp.float32)).astype(o_ref.dtype)

    return kernel


# --------------------------------------------------------------------------
# Path B: stream N in (c_pad, tile_n) chunks — two pallas_calls.
# --------------------------------------------------------------------------
def _make_attn_kernel(c_real, c_pad, matmul_dtype):
    def kernel(x_ref, attn_ref, acc_ref):
        # Pass 1: accumulate energy over N tiles; softmax on the last tile.
        # x_ref: (1, c_pad, tile_n); attn_ref: (1, c_pad, c_pad) matmul_dtype;
        # acc_ref: VMEM (1, c_pad, c_pad) f32.
        k = pl.program_id(1)

        @pl.when(k == 0)
        def _init():
            acc_ref[...] = jnp.zeros_like(acc_ref)

        xm = x_ref[...].astype(matmul_dtype)
        acc_ref[...] += lax.dot_general(
            xm, xm,
            dimension_numbers=(((2,), (2,)), ((0,), (0,))),
            preferred_element_type=jnp.float32)

        @pl.when(k == pl.num_programs(1) - 1)
        def _finalize():
            energy = acc_ref[...]
            if c_pad != c_real:
                energy = energy + _channel_pad_bias(c_real, c_pad)
            attn_ref[...] = _softmax_rowmax_minus(energy).astype(attn_ref.dtype)

    return kernel


def _make_out_kernel(matmul_dtype):
    def kernel(gamma_ref, attn_ref, x_ref, o_ref):
        # Pass 2: out_tile = gamma * (attn @ x_tile) + x_tile (lane-dense tiles).
        x_t = x_ref[...]                                   # (1, c_pad, tile_n)
        out_t = lax.dot_general(
            attn_ref[...], x_t.astype(matmul_dtype),
            dimension_numbers=(((2,), (1,)), ((0,), (0,))),
            preferred_element_type=jnp.float32)
        o_ref[...] = (gamma_ref[0, 0] * out_t + x_t.astype(jnp.float32)).astype(o_ref.dtype)

    return kernel


# --------------------------------------------------------------------------
# Wrapper
# --------------------------------------------------------------------------
def cam_forward(x, gamma, *, matmul_dtype=None, vmem_budget_bytes=None,
                force_stream=False):
    """CAM forward. x: (B, C, H, W); gamma: learnable scalar (Scale, init 0).

    matmul_dtype: dtype fed to the MXU.  Defaults to bf16 when x is f32
    (native MXU path) with f32 accumulation and f32 softmax; pass jnp.float32
    for full-precision MXU feeds.
    """
    B, C, H, W = x.shape
    N = H * W
    dtype = x.dtype
    if matmul_dtype is None:
        matmul_dtype = jnp.bfloat16 if dtype == jnp.float32 else dtype
    itemsize = jnp.dtype(dtype).itemsize
    mm_itemsize = jnp.dtype(matmul_dtype).itemsize

    # Sublane packing follows the narrower of (storage, MXU-feed) dtype so the
    # MXU operands need no repack: 8 rows (32-bit), 16 (16-bit), 32 (8-bit).
    sub = 8 * (4 // min(itemsize, mm_itemsize))
    c_pad = _round_up(C, sub)

    physical = _vmem_capacity_bytes()
    if vmem_budget_bytes is None:
        # ~75% of physical VMEM for resident blocks: ~96 MiB on v5e/v6e
        # (128 MiB physical), ~48 MiB on v7x (64 MiB physical).
        vmem_budget_bytes = max(32 << 20, int(physical * 0.75))
    vmem_ceiling = max(32 << 20, int(physical * 0.85))

    def _clamp(v):
        return int(min(max(v, 32 << 20), vmem_ceiling))

    gamma_arr = jnp.asarray(gamma, jnp.float32).reshape(1, 1)

    # ---------------- Path A: whole-slab, batch-packed ----------------
    n_pad_fused = _round_up(N, 128)

    def _fused_block_bytes(bb):
        slab = bb * c_pad * n_pad_fused
        io = 2 * 2 * slab * itemsize          # double-buffered input + output
        tmp = slab * (4 + mm_itemsize)        # f32 out temp + MXU-dtype x copy
        sq = 3 * bb * c_pad * c_pad * 4       # energy / p / attn (f32)
        return io + tmp + sq

    use_fused = (not force_stream) and _fused_block_bytes(1) <= vmem_budget_bytes

    if use_fused:
        # Pack batch elements per grid step; keep >= 2 grid steps when B > 1 so
        # both v7x TensorCores get work on the "parallel" batch axis.
        # TODO(synk): for B == 1, add a second "parallel" axis splitting the C
        # rows of energy/attn/out so a single-sample call still uses both TCs.
        bb_cap = B if B == 1 else B // 2
        bb = 1
        for d in range(1, bb_cap + 1):
            if B % d == 0 and _fused_block_bytes(d) <= vmem_budget_bytes:
                bb = d

        x_flat = x.reshape(B, C, N)
        if (c_pad, n_pad_fused) != (C, N):
            x_flat = jnp.pad(x_flat, ((0, 0), (0, c_pad - C), (0, n_pad_fused - N)))

        vmem_limit = _clamp(int(1.25 * _fused_block_bytes(bb)))

        out_flat = pl.pallas_call(
            _make_fused_kernel(C, c_pad, matmul_dtype),
            out_shape=jax.ShapeDtypeStruct((B, c_pad, n_pad_fused), dtype),
            grid=(B // bb,),
            in_specs=[
                pl.BlockSpec(memory_space=pltpu.MemorySpace.SMEM),          # gamma
                pl.BlockSpec((bb, c_pad, n_pad_fused), lambda b: (b, 0, 0)),  # x
            ],
            out_specs=pl.BlockSpec((bb, c_pad, n_pad_fused), lambda b: (b, 0, 0)),
            compiler_params=pltpu.CompilerParams(
                dimension_semantics=("parallel",),
                vmem_limit_bytes=vmem_limit),
            cost_estimate=pl.CostEstimate(
                flops=4 * B * c_pad * c_pad * n_pad_fused,
                transcendentals=B * c_pad * c_pad,
                bytes_accessed=2 * B * c_pad * n_pad_fused * itemsize),
        )(gamma_arr, x_flat)

        return out_flat[:, :C, :N].reshape(B, C, H, W)

    # ---------------- Path B: N-streamed two-pass ----------------
    # MXU-friendly N tile: multiple of 256 preferred (2x256x256 MXUs on
    # v6e/v7x); always a multiple of 128 (v5e).  Shrink to respect the budget.
    tile_n0 = min(512, _round_up(N, 128))

    def _stream_bytes(tn):
        x_tiles = 2 * c_pad * tn * itemsize            # double-buffered x tile
        o_tiles = 2 * c_pad * tn * itemsize            # double-buffered out tile
        attn_sq = 2 * c_pad * c_pad * mm_itemsize      # double-buffered attn block
        acc_sq = c_pad * c_pad * 4                     # energy accumulator
        tmp1 = c_pad * tn * mm_itemsize + 4 * c_pad * c_pad * 4
        tmp2 = c_pad * tn * (4 + mm_itemsize)
        return max(x_tiles + attn_sq + acc_sq + tmp1,
                   x_tiles + o_tiles + attn_sq + tmp2)

    tile_n = tile_n0
    while tile_n > 128 and _stream_bytes(tile_n) > vmem_budget_bytes:
        tile_n = max(128, _round_up(tile_n // 2, 128))
    # TODO(synk): if c_pad^2 f32 alone exceeds the budget (C >~ 2048), split the
    # C rows of energy/attn/out into row blocks as an extra grid axis.

    n_pad = _round_up(N, tile_n)
    n_tiles = n_pad // tile_n

    x_flat = x.reshape(B, C, N)
    if (c_pad, n_pad) != (C, N):
        x_flat = jnp.pad(x_flat, ((0, 0), (0, c_pad - C), (0, n_pad - N)))

    vmem_limit = _clamp(int(1.25 * _stream_bytes(tile_n)))

    # Pass 1: attention matrix per batch element (reduction over N tiles).
    attn = pl.pallas_call(
        _make_attn_kernel(C, c_pad, matmul_dtype),
        out_shape=jax.ShapeDtypeStruct((B, c_pad, c_pad), matmul_dtype),
        grid=(B, n_tiles),
        in_specs=[pl.BlockSpec((1, c_pad, tile_n), lambda b, k: (b, 0, k))],
        out_specs=pl.BlockSpec((1, c_pad, c_pad), lambda b, k: (b, 0, 0)),
        scratch_shapes=[pltpu.VMEM((1, c_pad, c_pad), jnp.float32)],
        compiler_params=pltpu.CompilerParams(
            dimension_semantics=("parallel", "arbitrary"),
            vmem_limit_bytes=vmem_limit),
        cost_estimate=pl.CostEstimate(
            flops=2 * B * c_pad * c_pad * n_pad,
            transcendentals=B * c_pad * c_pad,
            bytes_accessed=B * c_pad * n_pad * itemsize
                           + B * c_pad * c_pad * mm_itemsize),
    )(x_flat)

    # Pass 2: out = gamma * (attn @ x) + x, streamed over lane-dense N tiles.
    out_flat = pl.pallas_call(
        _make_out_kernel(matmul_dtype),
        out_shape=jax.ShapeDtypeStruct((B, c_pad, n_pad), dtype),
        grid=(B, n_tiles),
        in_specs=[
            pl.BlockSpec(memory_space=pltpu.MemorySpace.SMEM),              # gamma
            pl.BlockSpec((1, c_pad, c_pad), lambda b, n: (b, 0, 0)),        # attn
            pl.BlockSpec((1, c_pad, tile_n), lambda b, n: (b, 0, n)),       # x
        ],
        out_specs=pl.BlockSpec((1, c_pad, tile_n), lambda b, n: (b, 0, n)),
        compiler_params=pltpu.CompilerParams(
            dimension_semantics=("parallel", "parallel"),
            vmem_limit_bytes=vmem_limit),
        cost_estimate=pl.CostEstimate(
            flops=2 * B * c_pad * c_pad * n_pad,
            transcendentals=0,
            bytes_accessed=2 * B * c_pad * n_pad * itemsize
                           + B * c_pad * c_pad * mm_itemsize),
    )(gamma_arr, attn, x_flat)

    return out_flat[:, :C, :N].reshape(B, C, H, W)


def _cam_reference(x, gamma, matmul_dtype=None):
    """Pure-JAX reference mirroring the PyTorch module (optionally with the
    same reduced-precision MXU feeds as the kernel, for matched comparison)."""
    B, C, H, W = x.shape
    q = x.reshape(B, C, -1).astype(jnp.float32)
    qm = q if matmul_dtype is None else q.astype(matmul_dtype)
    energy = jnp.einsum("bcn,bdn->bcd", qm, qm,
                        preferred_element_type=jnp.float32)
    energy_new = jnp.max(energy, axis=-1, keepdims=True) - energy
    attention = jax.nn.softmax(energy_new, axis=-1)
    am = attention if matmul_dtype is None else attention.astype(matmul_dtype)
    out = jnp.einsum("bcd,bdn->bcn", am, qm,
                     preferred_element_type=jnp.float32).reshape(B, C, H, W)
    return (gamma * out + x.astype(jnp.float32)).astype(x.dtype)


if __name__ == "__main__":
    key = jax.random.PRNGKey(0)
    B, C, H, W = 2, 8, 16, 16
    x = jax.random.normal(key, (B, C, H, W), dtype=jnp.float32)

    # gamma = Scale(0): learnable scalar initialised to 0 -> output == x exactly
    # regardless of MXU feed dtype.
    out0 = cam_forward(x, jnp.float32(0.0))
    jax.block_until_ready(out0)
    assert out0.shape == x.shape and out0.dtype == x.dtype
    assert jnp.allclose(out0, x, atol=1e-6), "gamma=0 must be identity"

    gamma = jnp.float32(0.5)

    # Default: fused whole-slab path, bf16 MXU feeds + f32 accumulation/softmax.
    out_bf16 = cam_forward(x, gamma)
    jax.block_until_ready(out_bf16)
    ref_bf16 = _cam_reference(x, gamma, matmul_dtype=jnp.bfloat16)
    assert jnp.allclose(out_bf16, ref_bf16, atol=3e-2, rtol=3e-2), \
        "mismatch vs reference (bf16 MXU feeds)"

    # Full-precision MXU feeds.
    out_f32 = cam_forward(x, gamma, matmul_dtype=jnp.float32)
    jax.block_until_ready(out_f32)
    ref_f32 = _cam_reference(x, gamma)
    assert jnp.allclose(out_f32, ref_f32, atol=5e-3, rtol=5e-3), \
        "mismatch vs reference (f32 MXU feeds)"

    # N-streamed two-pass path (what large C*N shapes / v7x take automatically).
    out_stream = cam_forward(x, gamma, force_stream=True)
    jax.block_until_ready(out_stream)
    assert jnp.allclose(out_stream, ref_bf16, atol=3e-2, rtol=3e-2), \
        "mismatch vs reference (streamed two-pass path)"

    print("KERNEL_OK")
</pallas_src>

<mosaic_0001>
module attributes {stable_mosaic.version = 11 : i64} {
  func.func @kernel(%arg0: i32, %arg1: memref<1x1xf32, #tpu.memory_space<smem>>, %arg2: memref<1x16x256xf32, #tpu.memory_space<vmem>>, %arg3: memref<1x16x256xf32, #tpu.memory_space<vmem>>) attributes {dimension_semantics = [#tpu.dimension_semantics<parallel>], iteration_bounds = array<i64: 2>, scalar_prefetch = 0 : i64, scratch_operands = 0 : i64, tpu.core_type = #tpu.core_type<tc>, window_params = [{transform_indices = @transform_0, window_bounds = array<i64: 1, 1>}, {transform_indices = @transform_1, window_bounds = array<i64: 1, 16, 256>}, {transform_indices = @transform_2, window_bounds = array<i64: 1, 16, 256>}]} {
    %c0 = arith.constant 0 : index
    %c0_0 = arith.constant 0 : index
    %c0_1 = arith.constant 0 : index
    %0 = vector.load %arg2[%c0, %c0_0, %c0_1] : memref<1x16x256xf32, #tpu.memory_space<vmem>>, vector<1x16x256xf32>
    %1 = arith.truncf %0 : vector<1x16x256xf32> to vector<1x16x256xbf16>
    %cst = arith.constant dense<0.000000e+00> : vector<1x16x16xf32>
    %2 = tpu.matmul %1, %1, %cst {dimension_numbers = #tpu.dot_dimension_numbers<[2], [2], [1], [1], [0, 0, 0, 1, 1, 1], [0], [0]>} : vector<1x16x256xbf16>, vector<1x16x256xbf16>, vector<1x16x16xf32> -> vector<1x16x16xf32>
    %3 = tpu.iota {dimensions = array<i32: 2>} : vector<1x1x16xi32>
    %c8_i32 = arith.constant 8 : i32
    %4 = vector.broadcast %c8_i32 : i32 to vector<1x1x16xi32>
    %5 = arith.cmpi slt, %3, %4 : vector<1x1x16xi32>
    %cst_2 = arith.constant 0.000000e+00 : f32
    %cst_3 = arith.constant 0x7F800000 : f32
    %6 = vector.broadcast %cst_2 : f32 to vector<1x1x16xf32>
    %7 = vector.broadcast %cst_3 : f32 to vector<1x1x16xf32>
    %8 = arith.select %5, %6, %7 : vector<1x1x16xi1>, vector<1x1x16xf32>
    %9 = vector.broadcast %8 : vector<1x1x16xf32> to vector<1x16x16xf32>
    %10 = arith.addf %2, %9 : vector<1x16x16xf32>
    %cst_4 = arith.constant dense<0x7F800000> : vector<1x16xf32>
    %11 = vector.multi_reduction <minimumf>, %10, %cst_4 [2] : vector<1x16x16xf32> to vector<1x16xf32>
    %12 = vector.shape_cast %11 : vector<1x16xf32> to vector<1x16x1xf32>
    %13 = vector.broadcast %12 : vector<1x16x1xf32> to vector<1x16x16xf32>
    %14 = arith.subf %13, %10 : vector<1x16x16xf32>
    %15 = math.exp %14 : vector<1x16x16xf32>
    %cst_5 = arith.constant dense<0.000000e+00> : vector<1x16xf32>
    %16 = vector.multi_reduction <add>, %15, %cst_5 [2] : vector<1x16x16xf32> to vector<1x16xf32>
    %17 = vector.shape_cast %16 : vector<1x16xf32> to vector<1x16x1xf32>
    %18 = tpu.reciprocal %17 {approx = true} : vector<1x16x1xf32> -> vector<1x16x1xf32>
    %19 = vector.broadcast %18 : vector<1x16x1xf32> to vector<1x16x16xf32>
    %20 = arith.mulf %15, %19 : vector<1x16x16xf32>
    %21 = arith.truncf %20 : vector<1x16x16xf32> to vector<1x16x16xbf16>
    %cst_6 = arith.constant dense<0.000000e+00> : vector<1x16x256xf32>
    %22 = tpu.matmul %21, %1, %cst_6 {dimension_numbers = #tpu.dot_dimension_numbers<[2], [1], [1], [2], [0, 0, 0, 1, 1, 2], [0], [0]>} : vector<1x16x16xbf16>, vector<1x16x256xbf16>, vector<1x16x256xf32> -> vector<1x16x256xf32>
    %c0_7 = arith.constant 0 : index
    %c0_8 = arith.constant 0 : index
    %23 = memref.load %arg1[%c0_7, %c0_8] : memref<1x1xf32, #tpu.memory_space<smem>>
    %24 = vector.broadcast %23 : f32 to vector<1x16x256xf32>
    %25 = arith.mulf %24, %22 : vector<1x16x256xf32>
    %26 = arith.addf %25, %0 : vector<1x16x256xf32>
    %c0_9 = arith.constant 0 : index
    %c0_10 = arith.constant 0 : index
    %c0_11 = arith.constant 0 : index
    %27 = vector.load %arg3[%c0_9, %c0_10, %c0_11] : memref<1x16x256xf32, #tpu.memory_space<vmem>>, vector<1x16x256xf32>
    tpu.vector_store %arg3[%c0_9, %c0_10, %c0_11], %26 {strides = array<i32>} : memref<1x16x256xf32, #tpu.memory_space<vmem>>, vector<1x16x256xf32>,
    return
  }
  func.func @transform_0(%arg0: i32) -> (i32, i32) {
    %c0_i32 = arith.constant 0 : i32
    %c0_i32_0 = arith.constant 0 : i32
    %c0_i32_1 = arith.constant 0 : i32
    return %c0_i32, %c0_i32_0 : i32, i32
  }
  func.func @transform_1(%arg0: i32) -> (i32, i32, i32) {
    %c0_i32 = arith.constant 0 : i32
    %c0_i32_0 = arith.constant 0 : i32
    %c0_i32_1 = arith.constant 0 : i32
    return %arg0, %c0_i32, %c0_i32_0 : i32, i32, i32
  }
  func.func @transform_2(%arg0: i32) -> (i32, i32, i32) {
    %c0_i32 = arith.constant 0 : i32
    %c0_i32_0 = arith.constant 0 : i32
    %c0_i32_1 = arith.constant 0 : i32
    return %arg0, %c0_i32, %c0_i32_0 : i32, i32, i32
  }
}

</mosaic_0001>

<llo_original>
// kernel: tpu_custom_call.1
$region0: #{tpu_custom_call.1}
  #allocation0 [shape = 'u32[]', space=smem, size = 0x4, offset = 0x4, fixed_abs, tag = 'smem constant byte address 0x4 - core index']
  #allocation1 [shape = 'u32[72,128]{1,0:T(1,128)}', space=vmem, size = 0x9000, scoped, tag = 'internal scratch']
  #allocation2 [shape = 'f32[1,1]{1,0:T(1,128)S(6)}', space=smem, size = 0x200, scoped, tag = 'scoped memory for tpu_custom_call.1']
  %s0 = inlined_call_operand.<no memory space> [shape: f32[1,1], index: 0, kind: input, shape index: {}]
  %s1 = inlined_call_operand.hbm [shape: f32[2,16,256], index: 1, kind: input, shape index: {}]
  %s2 = inlined_call_operand.hbm [shape: f32[2,16,256], index: 2, kind: output, shape index: {}]
  %s3 = sld [smem:[#allocation0]]
  $region45: #{tpu_custom_call.1} parent=0
    _
  %s5 = ssub.s32 1, %s3
  %s6 = scalar_select 0, %s5, %s3
  %7 = sst [smem:[#allocation2]] %s0
  $region1: #{tpu_custom_call.1} parent=0
    #allocation3 [shape = 'u8[32768]{0}', space=vmem, size = 0x8000, scoped, tag = 'input window, operand 1']
    #allocation4 [shape = 's32[2]{0}', space=sflag, size = 0x8, scoped, tag = 'scoped memory for tpu_custom_call.1']
    #allocation5 [shape = 's32[2]{0}', space=sflag, size = 0x8, scoped, tag = 'scoped memory for tpu_custom_call.1']
    #allocation6 [shape = 'u8[32768]{0}', space=vmem, size = 0x8000, scoped, tag = 'output window, operand 0']
    %8 = vsyncpa [#allocation4], 0
    %s9 = scalar_lea.sflag [#allocation4], 1
    %10 = vsyncpa %s9, 0
    %11 = vsyncpa [#allocation5], 0
    %s12 = scalar_lea.sflag [#allocation5], 1
    %13 = vsyncpa %s12, 0
    loop: start=0, step=1, limit=4
    $region2: #{tpu_custom_call.1} parent=1 // loop_pre_header
      _
    $region3: #{tpu_custom_call.1} parent=1 // loop_header
      %s15 = sphi 0, %s19
      %p16 = scmp.ge.s32.totalorder %s15, 4
      %s23 = sphi 0, %s23
      %s25 = sphi 0, %s23
      %s26 = sphi 0, %s25
      %s40 = sphi 0, %s26
      %s46 = sphi 0, %s48
      %s49 = sphi 0, %s46
      %s50 = sphi 0, %s49
      %s66 = sphi 0, %s50
      %s72 = sphi 0, %s74
      %s75 = sphi 0, %s72
      %s76 = sphi 0, %s75
      %s92 = sphi 0, %s76
    $region4: #{tpu_custom_call.1} parent=1 // loop_header_branch
      %18 = sbr.rel (%p16) target = $region8
    $region5: #{tpu_custom_call.1} parent=1 // loop_body
      %s20 = ssub.s32 %s15, 1
      %s21 = ssub.s32 %s15, 2
      %s22 = sadd.s32 %s15, 1
      %s24 = sadd.s32 %s23, 1
      %p27 = scmp.eq.s32.totalorder %s15, 1
      %p28 = scmp.ne.s32.totalorder %s23, %s25
      %p29 = scmp.eq.s32.totalorder %s15, 0
      %p30 = por %p28, %p29
      %p31 = scmp.ne.s32.totalorder %s23, %s25
      %p32 = scmp.eq.s32.totalorder %s20, 1
      %p33 = por %p31, %p32
      %p34 = scmp.ne.s32.totalorder %s25, %s26
      %p35 = scmp.eq.s32.totalorder %s20, 0
      %p36 = por %p34, %p35
      %p37 = scmp.ne.s32.totalorder %s25, %s26
      %p38 = scmp.eq.s32.totalorder %s21, 1
      %p39 = por %p37, %p38
      %p41 = scmp.ne.s32.totalorder %s26, %s40
      %p42 = scmp.eq.s32.totalorder %s21, 0
      %p43 = por %p41, %p42
      %s44 = ssub.s32 %s15, %s22
      %p45 = scmp.eq.s32.totalorder %s44, 0
      %s47 = sadd.s32 %s46, 1
      %s48 = scalar_select %p45, %s46, %s47
      %p51 = pneg %p45
      %p52 = scmp.eq.s32.totalorder %s15, 1
      %p53 = por %p51, %p52
      %p54 = scmp.ne.s32.totalorder %s46, %s49
      %p55 = scmp.eq.s32.totalorder %s15, 0
      %p56 = por %p54, %p55
      %p57 = scmp.ne.s32.totalorder %s46, %s49
      %p58 = scmp.eq.s32.totalorder %s20, 1
      %p59 = por %p57, %p58
      %p60 = scmp.ne.s32.totalorder %s49, %s50
      %p61 = scmp.eq.s32.totalorder %s20, 0
      %p62 = por %p60, %p61
      %p63 = scmp.ne.s32.totalorder %s49, %s50
      %p64 = scmp.eq.s32.totalorder %s21, 1
      %p65 = por %p63, %p64
      %p67 = scmp.ne.s32.totalorder %s50, %s66
      %p68 = scmp.eq.s32.totalorder %s21, 0
      %p69 = por %p67, %p68
      %s70 = ssub.s32 %s15, %s22
      %p71 = scmp.eq.s32.totalorder %s70, 0
      %s73 = sadd.s32 %s72, 1
      %s74 = scalar_select %p71, %s72, %s73
      %p77 = pneg %p71
      %p78 = scmp.eq.s32.totalorder %s15, 1
      %p79 = por %p77, %p78
      %p80 = scmp.ne.s32.totalorder %s72, %s75
      %p81 = scmp.eq.s32.totalorder %s15, 0
      %p82 = por %p80, %p81
      %p83 = scmp.ne.s32.totalorder %s72, %s75
      %p84 = scmp.eq.s32.totalorder %s20, 1
      %p85 = por %p83, %p84
      %p86 = scmp.ne.s32.totalorder %s75, %s76
      %p87 = scmp.eq.s32.totalorder %s20, 0
      %p88 = por %p86, %p87
      %p89 = scmp.ne.s32.totalorder %s75, %s76
      %p90 = scmp.eq.s32.totalorder %s21, 1
      %p91 = por %p89, %p90
      %p93 = scmp.ne.s32.totalorder %s76, %s92
      %p94 = scmp.eq.s32.totalorder %s21, 0
      %p95 = por %p93, %p94
      %p96 = scmp.le.s32.totalorder 1, %s15
      %p97 = scmp.lt.s32.totalorder %s15, 3
      %p98 = pnand %p96, %p97
      %p99 = pneg %p98
      // Predicated region
      $region9: #{tpu_custom_call.1} parent=5 // pred_check
        _
      $region10: #{tpu_custom_call.1} parent=5 // pred_check_branch
        %101 = sbr.rel (%p98) target = $region12
      $region11: #{tpu_custom_call.1} parent=5 // pred_region
        %s102 = ssub.s32 %s15, 1
        // Predicated region
        $region13: #{tpu_custom_call.1} parent=11 // pred_check
          %p103 = pneg %p36
        $region14: #{tpu_custom_call.1} parent=11 // pred_check_branch
          %105 = sbr.rel (%p103) target = $region16
        $region15: #{tpu_custom_call.1} parent=11 // pred_region
          _
        $region16: #{tpu_custom_call.1} parent=11 // pred_fallthru
          _
      $region12: #{tpu_custom_call.1} parent=5 // pred_fallthru
        _
      %p106 = scmp.lt.s32.totalorder %s15, 2
      // Predicated region
      $region17: #{tpu_custom_call.1} parent=5 // pred_check
        %p107 = pneg %p106
      $region18: #{tpu_custom_call.1} parent=5 // pred_check_branch
        %109 = sbr.rel (%p107) target = $region20
      $region19: #{tpu_custom_call.1} parent=5 // pred_region
        // Predicated region
        $region21: #{tpu_custom_call.1} parent=19 // pred_check
          %p110 = pneg %p56
        $region22: #{tpu_custom_call.1} parent=19 // pred_check_branch
          %112 = sbr.rel (%p110) target = $region24
        $region23: #{tpu_custom_call.1} parent=19 // pred_region
          %s113 = sand.u32 %s46, 1
          %s114 = scalar_lea.sflag [#allocation4], %s113
          %s115 = sand.u32 %s46, 1
          %s116 = smul.addr %s115, 32
          %s117 = scalar_lea.vmem [#allocation3], %s116
          %119 = vsyncadd %s114, 0
          %s120 = smul.addr %s15, 4
          %s121 = smul.addr %s120, 8
          %s122 = scalar_lea.hbm %s1, %s121
          %s123 = sshll.u32 %s122, 4
          %s124 = int_to_ptr.hbm [resolvable:$true] %s123
          %s125 = sshll.u32 %s117, 4
          %s126 = int_to_ptr.vmem [resolvable:$true] %s125
          %131 = dma.hbm_to_vmem [thread:$0]  %s124, 512, %s126, %s114, 256, 256, 16
        $region24: #{tpu_custom_call.1} parent=19 // pred_fallthru
          _
      $region20: #{tpu_custom_call.1} parent=5 // pred_fallthru
        _
      %p132 = scmp.le.s32.totalorder 1, %s15
      %p133 = scmp.lt.s32.totalorder %s15, 3
      %p134 = pnand %p132, %p133
      %p135 = pneg %p134
      // Predicated region
      $region25: #{tpu_custom_call.1} parent=5 // pred_check
        _
      $region26: #{tpu_custom_call.1} parent=5 // pred_check_branch
        %137 = sbr.rel (%p134) target = $region28
      $region27: #{tpu_custom_call.1} parent=5 // pred_region
        %s138 = ssub.s32 %s15, 1
        %s139 = sand.u32 %s49, 1
        %s140 = scalar_lea.sflag [#allocation4], %s139
        %s141 = sand.u32 %s49, 1
        %s142 = smul.addr %s141, 32
        %s143 = scalar_lea.vmem [#allocation3], %s142
        // Predicated region
        $region29: #{tpu_custom_call.1} parent=27 // pred_check
          %p144 = pneg %p62
        $region30: #{tpu_custom_call.1} parent=27 // pred_check_branch
          %146 = sbr.rel (%p144) target = $region32
        $region31: #{tpu_custom_call.1} parent=27 // pred_region
          %148 = dma.done %s140, 512
        $region32: #{tpu_custom_call.1} parent=27 // pred_fallthru
          _
        %p149 = pneg %p36
        %p150 = pneg %p33
        %s151 = sand.u32 %s49, 1
        %s152 = scalar_lea.sflag [#allocation4], %s151
        %s153 = sand.u32 %s49, 1
        %s154 = smul.addr %s153, 32
        %s155 = scalar_lea.vmem [#allocation3], %s154
        %p156 = pneg %p62
        %p157 = pneg %p59
        %p158 = pneg %p88
        %p159 = pneg %p85
        %s160 = sand.u32 %s75, 1
        %s161 = scalar_lea.sflag [#allocation5], %s160
        %s162 = sand.u32 %s75, 1
        %s163 = smul.addr %s162, 32
        %s164 = scalar_lea.vmem [#allocation6], %s163
        %v166 = vld [vmem:[%s143] sm:$0xff]
        %v167 = vld [vmem:[%s143 + $0x8] sm:$0xff]
        %v168 = vld [vmem:[%s143 + $0x10] sm:$0xff]
        %v169 = vld [vmem:[%s143 + $0x18] sm:$0xff]
        %v170 = vpack.c.bf16 %v167, %v166
        %v171 = vpack.c.bf16 %v169, %v168
        %v172 = vlaneseq
        %v173 = vand.u32 %v172, 127
        %vm174 = vcmp.lt.s32.totalorder %v173, 8
        %v175 = vsel %vm174, 0.0, inf
        %v178 = vunpack.c.l.b16 %v170
        %v179 = vunpack.c.h.b16 %v170
        %v180 = vunpack.c.l.b16 %v171
        %v181 = vunpack.c.h.b16 %v171
        %v182 = vpack.c.b16 %v180, %v178
        %v183 = vpack.c.b16 %v181, %v179
        %186 = vmatpush.bf16.xpose.msra.mxu0 0
        %187 = vmatpush.bf16.xpose.msra.mxu0 0
        %188 = vmatpush.bf16.xpose.msra.mxu0 0
        %189 = vmatpush.bf16.xpose.msra.mxu0 0
        %190 = vmatpush.bf16.xpose.msra.mxu0 0
        %191 = vmatpush.bf16.xpose.msra.mxu0 0
        %192 = vmatpush.bf16.xpose.msra.mxu0 0
        %193 = vmatpush.bf16.xpose.msra.mxu0 %v182
        %194 = vmatmul.bf16.gmra.mxu0 %v182
        %v195 = vpop.f32.mrf.mxu0
        %v196 = vadd.f32 %v175, %v195
        %v197 = vpop.f32.mrf.mxu0
        %v198 = vadd.f32 %v175, %v197
        %199 = vdwg.mxu0
        %200 = vmatpush.bf16.xpose.msra.mxu0 0
        %201 = vmatpush.bf16.xpose.msra.mxu0 0
        %202 = vmatpush.bf16.xpose.msra.mxu0 0
        %203 = vmatpush.bf16.xpose.msra.mxu0 0
        %204 = vmatpush.bf16.xpose.msra.mxu0 0
        %205 = vmatpush.bf16.xpose.msra.mxu0 0
        %206 = vmatpush.bf16.xpose.msra.mxu0 0
        %207 = vmatpush.bf16.xpose.msra.mxu0 %v183
        %208 = vmatmul.bf16.gmra.mxu0 %v183
        %v209 = vpop.f32.mrf.mxu0
        %v210 = vadd.f32 %v196, %v209
        %v211 = vpop.f32.mrf.mxu0
        %v212 = vadd.f32 %v198, %v211
        %213 = vdwg.mxu0
        %vm214 = vcmask 130048
        %v215 = vsel %vm214, %v210, inf
        %216 = vmin.xlane.f32.xlu0 %v215
        %v217 = vpop.xlane.xlu0 %216
        %v218 = vsel %vm214, %v212, inf
        %219 = vmin.xlane.f32.xlu0 %v218
        %v220 = vpop.xlane.xlu0 %219
        %v221 = vsub.f32 %v217, %v210
        %v222 = vsub.f32 %v220, %v212
        %v223 = vmul.f32 %v221, 1.442695
        %v224 = vpow.pop %v223
        %v225 = vmul.f32 %v222, 1.442695
        %v226 = vpow.pop %v225
        %v227 = vsel %vm214, %v224, 0.0
        %228 = vadd.xlane.f32.xlu0 %v227
        %v229 = vpop.xlane.xlu0 %228
        %v230 = vsel %vm214, %v226, 0.0
        %231 = vadd.xlane.f32.xlu0 %v230
        %v232 = vpop.xlane.xlu0 %231
        %v233 = vrcp.pop %v229
        %v234 = vrcp.pop %v232
        %v235 = vmul.f32 %v224, %v233
        %v236 = vmul.f32 %v226, %v234
        %v237 = vpack.c.bf16 %v235, %v235
        %v238 = vpack.c.bf16 %v236, %v236
        %v241 = vunpack.c.l.b16 %v237
        %v242 = vunpack.c.l.b16 %v238
        %v243 = vpack.c.b16 %v242, %v241
        %v245 = vsel %vm214, %v243, 0
        %247 = vmatpush.bf16.msra.mxu0 0
        %248 = vmatpush.bf16.msra.mxu0 0
        %249 = vmatpush.bf16.msra.mxu0 0
        %250 = vmatpush.bf16.msra.mxu0 0
        %251 = vmatpush.bf16.msra.mxu0 0
        %252 = vmatpush.bf16.msra.mxu0 0
        %253 = vmatpush.bf16.msra.mxu0 0
        %254 = vmatpush.bf16.msra.mxu0 %v182
        %255 = vmatmul.bf16.gmra.mxu0 %v245
        %v256 = vpop.f32.mrf.mxu0
        %v257 = vadd.f32 0.0, %v256
        %v258 = vpop.f32.mrf.mxu0
        %v259 = vadd.f32 0.0, %v258
        %260 = vdwg.mxu0
        %261 = vmatpush.bf16.msra.mxu0 0
        %262 = vmatpush.bf16.msra.mxu0 0
        %263 = vmatpush.bf16.msra.mxu0 0
        %264 = vmatpush.bf16.msra.mxu0 0
        %265 = vmatpush.bf16.msra.mxu0 0
        %266 = vmatpush.bf16.msra.mxu0 0
        %267 = vmatpush.bf16.msra.mxu0 0
        %268 = vmatpush.bf16.msra.mxu0 %v183
        %269 = vmatmul.bf16.gmra.mxu0 %v245
        %v270 = vpop.f32.mrf.mxu0
        %v271 = vadd.f32 0.0, %v270
        %v272 = vpop.f32.mrf.mxu0
        %v273 = vadd.f32 0.0, %v272
        %274 = vdwg.mxu0
        %s275 = sld [smem:[#allocation2]]
        %v276 = vstv %s275
        %v277 = vmul.f32 %v276, %v257
        %v278 = vmul.f32 %v276, %v271
        %v279 = vmul.f32 %v276, %v259
        %v280 = vmul.f32 %v276, %v273
        %v281 = vadd.f32 %v277, %v166
        %v282 = vadd.f32 %v278, %v167
        %v283 = vadd.f32 %v279, %v168
        %v284 = vadd.f32 %v280, %v169
        %285 = vst [vmem:[%s164] sm:$0xff] %v281
        %286 = vst [vmem:[%s164 + $0x8] sm:$0xff] %v282
        %287 = vst [vmem:[%s164 + $0x10] sm:$0xff] %v283
        %288 = vst [vmem:[%s164 + $0x18] sm:$0xff] %v284
        %s289 = sand.u32 %s75, 1
        %s290 = scalar_lea.sflag [#allocation5], %s289
        %s291 = sand.u32 %s75, 1
        %s292 = smul.addr %s291, 32
        %s293 = scalar_lea.vmem [#allocation6], %s292
        // Predicated region
        $region33: #{tpu_custom_call.1} parent=27 // pred_check
          %p294 = pneg %p85
        $region34: #{tpu_custom_call.1} parent=27 // pred_check_branch
          %296 = sbr.rel (%p294) target = $region36
        $region35: #{tpu_custom_call.1} parent=27 // pred_region
          %298 = vsyncadd %s290, 0
          %s299 = smul.addr %s20, 4
          %s300 = smul.addr %s299, 8
          %s301 = scalar_lea.hbm %s2, %s300
          %s302 = sshll.u32 %s293, 4
          %s303 = int_to_ptr.vmem [resolvable:$true] %s302
          %s304 = sshll.u32 %s301, 4
          %s305 = int_to_ptr.hbm [resolvable:$true] %s304
          %310 = dma.vmem_to_hbm [thread:$0]  %s303, 512, %s305, %s290, 256, 256, 16
        $region36: #{tpu_custom_call.1} parent=27 // pred_fallthru
          _
      $region28: #{tpu_custom_call.1} parent=5 // pred_fallthru
        _
      %p311 = scmp.le.s32.totalorder 2, %s15
      // Predicated region
      $region37: #{tpu_custom_call.1} parent=5 // pred_check
        %p312 = pneg %p311
      $region38: #{tpu_custom_call.1} parent=5 // pred_check_branch
        %314 = sbr.rel (%p312) target = $region40
      $region39: #{tpu_custom_call.1} parent=5 // pred_region
        %s315 = ssub.s32 %s15, 2
        // Predicated region
        $region41: #{tpu_custom_call.1} parent=39 // pred_check
          %p316 = pneg %p91
        $region42: #{tpu_custom_call.1} parent=39 // pred_check_branch
          %318 = sbr.rel (%p316) target = $region44
        $region43: #{tpu_custom_call.1} parent=39 // pred_region
          %s319 = sand.u32 %s76, 1
          %s320 = scalar_lea.sflag [#allocation5], %s319
          %s321 = sand.u32 %s76, 1
          %s322 = smul.addr %s321, 32
          %s323 = scalar_lea.vmem [#allocation6], %s322
          %325 = dma.done %s320, 512
        $region44: #{tpu_custom_call.1} parent=39 // pred_fallthru
          _
      $region40: #{tpu_custom_call.1} parent=5 // pred_fallthru
        _
    $region6: #{tpu_custom_call.1} parent=1 // loop_footer
      %s19 = sadd.s32 1, %s15
    $region7: #{tpu_custom_call.1} parent=1 // loop_footer_branch
      %14 = sbr.rel target = $region3
    $region8: #{tpu_custom_call.1} parent=1 // loop_exit
      _
    %326 = vsyncpa [#allocation4], 1
    %s327 = scalar_lea.sflag [#allocation4], 1
    %328 = vsyncpa %s327, 1
    %329 = vsyncpa [#allocation5], 1
    %s330 = scalar_lea.sflag [#allocation5], 1
    %331 = vsyncpa %s330, 1

</llo_original>
